<compile_context>
chip_gen: v5e
topology: v5e:2x2
jax: 0.10.0
libtpu: 0.0.40
codegen_flags: <defaults>
</compile_context>

<pallas_src>
import math
import functools

import jax
import jax.numpy as jnp
from jax.experimental import pallas as pl
from jax.experimental.pallas import tpu as pltpu


# ----------------------------- generation-aware VMEM budget -----------------------------

def _tpu_vmem_capacity_bytes():
    try:
        return int(pltpu.get_tpu_info().vmem_capacity_bytes)
    except Exception:
        return 128 * 1024 * 1024   # v5e / v6e default if the query is unavailable


_VMEM_CAP = _tpu_vmem_capacity_bytes()
# v5e/v6e (128 MiB physical): ~100 MiB scoped limit; v7x (64 MiB): ~48 MiB,
# leaving headroom for compiler-internal scratch.
_VMEM_LIMIT = int(min(_VMEM_CAP - (16 << 20), 100 << 20))


def _dense_tile_defaults():
    # Bigger tiles on 128 MiB parts (amortize ~0.35us/grid step, longer MXU runs per
    # DMA); keep tn/tk modest on v7x's 64 MiB VMEM.
    if _VMEM_CAP >= (96 << 20):
        return 256, 512, 1024      # tm, tn, tk   (v5e / v6e)
    return 256, 256, 512           # v7x


ATTN_SMALL_NAMES = [
    "b_sqkv", "b_so", "b_cq", "b_ckv", "b_co",
    "g_pre_self", "beta_pre_self", "g_pre_cross", "beta_pre_cross",
    "g_pre_ff", "beta_pre_ff",
]
ATTN_WEIGHT_NAMES = ["W_sqkv", "W_so", "W_cq", "W_ckv", "W_co"]


# ----------------------------- in-kernel helpers -----------------------------

def _erf_approx(x):
    # Abramowitz & Stegun 7.1.26 polynomial erf (|err| < 1.5e-7).  Keeps GELU
    # erf-based (nn.GELU() default).
    a1, a2, a3, a4, a5 = 0.254829592, -0.284496736, 1.421413741, -1.453152027, 1.061405429
    p = 0.3275911
    s = jnp.where(x >= 0.0, 1.0, -1.0)
    ax = jnp.abs(x)
    t = pl.reciprocal(1.0 + p * ax, approx=True)
    poly = ((((a5 * t + a4) * t + a3) * t + a2) * t + a1) * t
    return s * (1.0 - poly * jnp.exp(-ax * ax))


def _gelu_exact(x):
    return 0.5 * x * (1.0 + _erf_approx(x * (1.0 / math.sqrt(2.0))))


def _layernorm(v, g, b, eps=1e-5):
    mean = jnp.mean(v, axis=-1, keepdims=True)
    var = jnp.mean((v - mean) ** 2, axis=-1, keepdims=True)
    return (v - mean) * jax.lax.rsqrt(var + eps) * g + b


def _pick_tile(dim, target, unit):
    """Largest power-of-two-ish tile <= target that divides dim, else full dim."""
    if dim <= target:
        return dim
    t = target
    while t >= unit:
        if dim % t == 0:
            return t
        t //= 2
    return dim


# ----------------------------- attention block kernel -----------------------------

def attn_block_kernel(x_ref, img_ref,
                      b_sqkv_ref, b_so_ref, b_cq_ref, b_ckv_ref, b_co_ref,
                      g_s_ref, be_s_ref, g_c_ref, be_c_ref, g_f_ref, be_f_ref,
                      w_sqkv_hbm, w_so_hbm, w_cq_hbm, w_ckv_hbm, w_co_hbm,
                      x_mid_ref, ff_in_ref,
                      w_sqkv_v, w_so_v, w_cq_v, w_ckv_v, w_co_v, w_sems,
                      *, num_heads, use_mask):
    # Single-buffer the constant block weights: DMA HBM -> VMEM scratch once at
    # grid step 0; the scratch persists across the (sequential) batch grid.
    @pl.when(pl.program_id(0) == 0)
    def _():
        hbm = [w_sqkv_hbm, w_so_hbm, w_cq_hbm, w_ckv_hbm, w_co_hbm]
        vmem = [w_sqkv_v, w_so_v, w_cq_v, w_ckv_v, w_co_v]
        copies = [pltpu.make_async_copy(s, d, w_sems.at[n])
                  for n, (s, d) in enumerate(zip(hbm, vmem))]
        for c in copies:
            c.start()
        for c in copies:
            c.wait()

    S, H = x_ref.shape[1], x_ref.shape[2]
    head_dim = H // num_heads
    scale = head_dim ** (-0.5)

    # TODO(synk): dropout layers are identity (eval mode); debug print()s omitted.
    x = x_ref[0] * 0.1           # (S, H) f32  -- `x = x * 0.1`
    img = img_ref[0] * 0.1       # (P, H) f32  -- `image_features * 0.1`

    if use_mask:
        # Reference quirk reproduced exactly: masked_fill(causal_mask == 0, -10000)
        # with causal_mask = triu(ones, diagonal=1) fills positions j <= i.
        # Built in-kernel from two iotas (no (S,S) HBM mask DMA per batch element).
        row = jax.lax.broadcasted_iota(jnp.int32, (S, S), 0)
        col = jax.lax.broadcasted_iota(jnp.int32, (S, S), 1)
        fill = col <= row
    else:
        fill = None

    def mha(q, k, v, w_out_ref, fill_mask):
        # Per-head attention with the output projection folded into the head loop:
        #   out = sum_h softmax(q_h k_h^T * scale) v_h @ W_out[h*hd:(h+1)*hd, :]
        # -> no (S,H) per-head slab and no masked sub-128-lane scratch stores.
        qb = q.astype(jnp.bfloat16)
        kb = k.astype(jnp.bfloat16)
        vb = v.astype(jnp.bfloat16)
        acc = jnp.zeros((q.shape[0], H), jnp.float32)
        for h in range(num_heads):
            sl = slice(h * head_dim, (h + 1) * head_dim)
            # q_h @ k_h^T without an explicit transpose (contract last dims).
            s = jax.lax.dot_general(
                qb[:, sl], kb[:, sl],
                dimension_numbers=(((1,), (1,)), ((), ())),
                preferred_element_type=jnp.float32) * scale
            if fill_mask is not None:
                s = jnp.where(fill_mask, -10000.0, s)   # exact masked_fill semantics
            m = jnp.max(s, axis=-1, keepdims=True)
            e = jnp.exp(s - m)
            # -10000 fill is finite => softmax cannot NaN; nan_to_num dropped.
            p = e * pl.reciprocal(jnp.sum(e, axis=-1, keepdims=True), approx=True)
            o_h = jnp.dot(p.astype(jnp.bfloat16), vb[:, sl],
                          preferred_element_type=jnp.float32)
            acc = acc + jnp.dot(o_h.astype(jnp.bfloat16), w_out_ref[sl, :],
                                preferred_element_type=jnp.float32)
        return acc

    # ---- self attention (fused QKV projection) ----
    nx = _layernorm(x, g_s_ref[...], be_s_ref[...])
    qkv = jnp.dot(nx.astype(jnp.bfloat16), w_sqkv_v[...],
                  preferred_element_type=jnp.float32) + b_sqkv_ref[...]
    sa = mha(qkv[:, :H], qkv[:, H:2 * H], qkv[:, 2 * H:], w_so_v, fill)
    x = x + sa + b_so_ref[...]

    # ---- cross attention (no mask; fused K/V projection of image features) ----
    nx = _layernorm(x, g_c_ref[...], be_c_ref[...])
    q = jnp.dot(nx.astype(jnp.bfloat16), w_cq_v[...],
                preferred_element_type=jnp.float32) + b_cq_ref[...]
    kv = jnp.dot(img.astype(jnp.bfloat16), w_ckv_v[...],
                 preferred_element_type=jnp.float32) + b_ckv_ref[...]
    ca = mha(q, kv[:, :H], kv[:, H:], w_co_v, None)
    x = x + ca + b_co_ref[...]

    # residual stream (still at 0.1 scale) + pre-FF LayerNorm output for the fused FFN.
    x_mid_ref[0] = x.astype(x_mid_ref.dtype)
    ff_in_ref[0] = _layernorm(x, g_f_ref[...], be_f_ref[...]).astype(ff_in_ref.dtype)


def run_attention_block(x, img, bp, num_heads, use_mask):
    B, S, H = x.shape
    P = img.shape[1]
    small = [bp[n] for n in ATTN_SMALL_NAMES]
    big = [bp[n] for n in ATTN_WEIGHT_NAMES]
    in_specs = ([pl.BlockSpec((1, S, H), lambda b: (b, 0, 0)),
                 pl.BlockSpec((1, P, H), lambda b: (b, 0, 0))]
                + [pl.BlockSpec(t.shape, lambda b: (0, 0)) for t in small]
                + [pl.BlockSpec(memory_space=pl.ANY) for _ in big])
    x_mid, ff_in = pl.pallas_call(
        functools.partial(attn_block_kernel, num_heads=num_heads, use_mask=use_mask),
        grid=(B,),
        in_specs=in_specs,
        out_specs=(pl.BlockSpec((1, S, H), lambda b: (b, 0, 0)),
                   pl.BlockSpec((1, S, H), lambda b: (b, 0, 0))),
        out_shape=(jax.ShapeDtypeStruct((B, S, H), jnp.float32),    # residual stream
                   jax.ShapeDtypeStruct((B, S, H), jnp.bfloat16)),  # LN output (matmul feed)
        scratch_shapes=[pltpu.VMEM(t.shape, t.dtype) for t in big]
                       + [pltpu.SemaphoreType.DMA((len(big),))],
        compiler_params=pltpu.CompilerParams(
            # "arbitrary": the step-0 weight DMA must precede every other grid step.
            dimension_semantics=("arbitrary",),
            vmem_limit_bytes=_VMEM_LIMIT),
    )(x, img, *small, *big)
    return x_mid, ff_in


# ----------------------------- fused FFN kernel -----------------------------

def _ffn_block_kernel(x_ref, w1_ref, b1_ref, w2_ref, b2_ref, res_ref, o_ref, acc_ref):
    c = pl.program_id(1)

    @pl.when(c == 0)
    def _():
        acc_ref[...] = jnp.zeros_like(acc_ref)

    # gelu(x @ W1_chunk + b1_chunk) stays on-chip and immediately feeds W2_chunk;
    # the (M, 4H) intermediate never round-trips through HBM.
    h = jnp.dot(x_ref[...], w1_ref[...], preferred_element_type=jnp.float32) + b1_ref[...]
    h = _gelu_exact(h)
    acc_ref[...] += jnp.dot(h.astype(jnp.bfloat16), w2_ref[...],
                            preferred_element_type=jnp.float32)

    @pl.when(c == pl.num_programs(1) - 1)
    def _():
        r = acc_ref[...] + b2_ref[...] + res_ref[...]
        o_ref[...] = (r * 10.0).astype(o_ref.dtype)


def run_ffn_block(ff_in, x_mid, bp):
    """out = (x_mid + (gelu(ff_in @ W1 + b1) @ W2 + b2)) * 10, fused in one kernel."""
    B, S, H = x_mid.shape
    M = B * S
    F = bp["W_ff1"].shape[1]
    dm, _, dk = _dense_tile_defaults()
    tm = _pick_tile(M, dm, 8)
    tc = _pick_tile(F, dk, 128)
    out = pl.pallas_call(
        _ffn_block_kernel,
        grid=(M // tm, F // tc),
        in_specs=[pl.BlockSpec((tm, H), lambda i, c: (i, 0)),
                  pl.BlockSpec((H, tc), lambda i, c: (0, c)),
                  pl.BlockSpec((1, tc), lambda i, c: (0, c)),
                  pl.BlockSpec((tc, H), lambda i, c: (c, 0)),
                  pl.BlockSpec((1, H), lambda i, c: (0, 0)),
                  pl.BlockSpec((tm, H), lambda i, c: (i, 0))],
        out_specs=pl.BlockSpec((tm, H), lambda i, c: (i, 0)),
        out_shape=jax.ShapeDtypeStruct((M, H), jnp.float32),
        scratch_shapes=[pltpu.VMEM((tm, H), jnp.float32)],
        compiler_params=pltpu.CompilerParams(
            dimension_semantics=("parallel", "arbitrary"),
            vmem_limit_bytes=_VMEM_LIMIT),
    )(ff_in.reshape(M, H), bp["W_ff1"], bp["b_ff1"], bp["W_ff2"], bp["b_ff2"],
      x_mid.reshape(M, H))
    return out.reshape(B, S, H)


# ----------------------------- tiled dense kernel -----------------------------

def _dense_kernel(x_ref, w_ref, b_ref, o_ref, acc_ref):
    k = pl.program_id(2)

    @pl.when(k == 0)
    def _():
        acc_ref[...] = jnp.zeros_like(acc_ref)

    acc_ref[...] += jnp.dot(x_ref[...], w_ref[...], preferred_element_type=jnp.float32)

    @pl.when(k == pl.num_programs(2) - 1)
    def _():
        o_ref[...] = (acc_ref[...] + b_ref[...]).astype(o_ref.dtype)


def dense_tiled(x, w, b, *, out_dtype=jnp.float32, tm=None, tn=None, tk=None):
    """out = x @ w + b, M/N/K-tiled with an f32 VMEM accumulator.

    Pass x / w already in bf16 (wrapper-side cast) so HBM->VMEM DMAs move half the bytes.
    """
    M, K = x.shape
    N = w.shape[1]
    dm, dn, dk = _dense_tile_defaults()
    tm = _pick_tile(M, tm or dm, 8)
    tn = _pick_tile(N, tn or dn, 128)
    tk = _pick_tile(K, tk or dk, 128)
    grid = (M // tm, N // tn, K // tk)
    return pl.pallas_call(
        _dense_kernel,
        grid=grid,
        in_specs=[pl.BlockSpec((tm, tk), lambda i, j, k: (i, k)),
                  pl.BlockSpec((tk, tn), lambda i, j, k: (k, j)),
                  pl.BlockSpec((1, tn), lambda i, j, k: (0, j))],
        out_specs=pl.BlockSpec((tm, tn), lambda i, j, k: (i, j)),
        out_shape=jax.ShapeDtypeStruct((M, N), out_dtype),
        scratch_shapes=[pltpu.VMEM((tm, tn), jnp.float32)],
        compiler_params=pltpu.CompilerParams(
            dimension_semantics=("parallel", "parallel", "arbitrary"),
            vmem_limit_bytes=_VMEM_LIMIT),
    )(x, w, b)


# ----------------------------- cross-entropy kernel (token + vocab tiled) -----------------------------

def _ce_kernel(logits_ref, labels_ref, o_ref, m_ref, l_ref, t_ref, *, inv_total, tile_v):
    i = pl.program_id(0)
    j = pl.program_id(1)

    @pl.when(jnp.logical_and(i == 0, j == 0))
    def _():
        o_ref[...] = jnp.zeros_like(o_ref)

    @pl.when(j == 0)
    def _():
        m_ref[...] = jnp.full_like(m_ref, -jnp.inf)
        l_ref[...] = jnp.zeros_like(l_ref)
        t_ref[...] = jnp.zeros_like(t_ref)

    logits = logits_ref[...]                    # (tn, tv) f32
    labels = labels_ref[...]                    # (tn, 1) int32
    m_prev = m_ref[...]
    m_new = jnp.maximum(m_prev, jnp.max(logits, axis=-1, keepdims=True))
    l_ref[...] = (l_ref[...] * jnp.exp(m_prev - m_new)
                  + jnp.sum(jnp.exp(logits - m_new), axis=-1, keepdims=True))
    m_ref[...] = m_new
    col = jax.lax.broadcasted_iota(jnp.int32, logits.shape, 1) + j * tile_v
    t_ref[...] += jnp.sum(jnp.where(col == labels, logits, 0.0), axis=-1, keepdims=True)

    @pl.when(j == pl.num_programs(1) - 1)
    def _():
        lse = m_ref[...] + jnp.log(l_ref[...])
        o_ref[...] += jnp.sum(lse - t_ref[...], axis=0, keepdims=True) * inv_total


def cross_entropy(logits2d, labels1d, *, tile_tokens=256):
    # nn.CrossEntropyLoss() default: mean over all shifted tokens (padding included),
    # exactly as in the reference (no ignore_index is passed there).
    N, V = logits2d.shape
    labels2d = labels1d.reshape(N, 1).astype(jnp.int32)
    tn = _pick_tile(N, tile_tokens, 8)
    tv_target = 4096 if _VMEM_CAP >= (96 << 20) else 2048
    tv = _pick_tile(V, tv_target, 128)
    out = pl.pallas_call(
        functools.partial(_ce_kernel, inv_total=1.0 / float(N), tile_v=tv),
        grid=(N // tn, V // tv),
        in_specs=[pl.BlockSpec((tn, tv), lambda i, j: (i, j)),
                  pl.BlockSpec((tn, 1), lambda i, j: (i, 0))],
        out_specs=pl.BlockSpec((1, 1), lambda i, j: (0, 0)),
        out_shape=jax.ShapeDtypeStruct((1, 1), jnp.float32),
        scratch_shapes=[pltpu.VMEM((tn, 1), jnp.float32)] * 3,
        compiler_params=pltpu.CompilerParams(
            dimension_semantics=("arbitrary", "arbitrary"),
            vmem_limit_bytes=_VMEM_LIMIT),
    )(logits2d, labels2d)
    return out[0, 0]


# ----------------------------- parameter init -----------------------------

def init_block_params(key, H):
    std = (2.0 / (5 * H)) ** 0.5
    ks = iter(jax.random.split(key, 16))
    p = {}
    for n in ["sq", "sk", "sv", "so", "cq", "ck", "cv", "co"]:
        p[f"W_{n}"] = (jax.random.normal(next(ks), (H, H)) * std).astype(jnp.float32)
        p[f"b_{n}"] = jnp.zeros((1, H), jnp.float32)
    p["W_ff1"] = (jax.random.normal(next(ks), (H, 4 * H)) * std).astype(jnp.float32)
    p["W_ff2"] = (jax.random.normal(next(ks), (4 * H, H)) * std).astype(jnp.float32)
    # feed-forward biases keep nn.Linear's default uniform init (not zeroed in reference)
    p["b_ff1"] = jax.random.uniform(next(ks), (1, 4 * H), jnp.float32,
                                    -1.0 / math.sqrt(H), 1.0 / math.sqrt(H))
    p["b_ff2"] = jax.random.uniform(next(ks), (1, H), jnp.float32,
                                    -1.0 / math.sqrt(4 * H), 1.0 / math.sqrt(4 * H))
    for n in ["pre_self", "pre_cross", "pre_ff"]:
        p[f"g_{n}"] = jnp.ones((1, H), jnp.float32)
        p[f"beta_{n}"] = jnp.zeros((1, H), jnp.float32)
    return p


def init_params(key, vocab_size, hidden_size, num_layers, max_pos, patch_dim):
    keys = iter(jax.random.split(key, 8))

    def normal(shape, std):
        return (jax.random.normal(next(keys), shape) * std).astype(jnp.float32)

    params = {}
    params["tok_emb"] = normal((vocab_size, hidden_size), 0.02)
    params["pos_emb"] = normal((max_pos, hidden_size), 0.02)
    out_std = (2.0 / (hidden_size + vocab_size)) ** 0.5
    params["out_w"] = normal((hidden_size, vocab_size), out_std)   # stored (in, out)
    params["out_b"] = jnp.zeros((1, vocab_size), jnp.float32)
    # TODO(synk): CLIPEncoder is not defined in the reference source; substituted a
    # deterministic patch-embedding encoder producing the same [B, num_patches, hidden] output.
    params["enc_w"] = normal((patch_dim, hidden_size), 0.02)
    params["enc_b"] = jnp.zeros((1, hidden_size), jnp.float32)
    params["blocks"] = [init_block_params(k2, hidden_size)
                        for k2 in jax.random.split(next(keys), num_layers)]
    return params


def _prepare_block(bp):
    """Fuse QKV / KV projection weights and cast the big matrices to bf16 once."""
    nb = {}
    nb["W_sqkv"] = jnp.concatenate([bp["W_sq"], bp["W_sk"], bp["W_sv"]], axis=1).astype(jnp.bfloat16)
    nb["b_sqkv"] = jnp.concatenate([bp["b_sq"], bp["b_sk"], bp["b_sv"]], axis=1)
    nb["W_so"] = bp["W_so"].astype(jnp.bfloat16)
    nb["b_so"] = bp["b_so"]
    nb["W_cq"] = bp["W_cq"].astype(jnp.bfloat16)
    nb["b_cq"] = bp["b_cq"]
    nb["W_ckv"] = jnp.concatenate([bp["W_ck"], bp["W_cv"]], axis=1).astype(jnp.bfloat16)
    nb["b_ckv"] = jnp.concatenate([bp["b_ck"], bp["b_cv"]], axis=1)
    nb["W_co"] = bp["W_co"].astype(jnp.bfloat16)
    nb["b_co"] = bp["b_co"]
    nb["W_ff1"] = bp["W_ff1"].astype(jnp.bfloat16)
    nb["b_ff1"] = bp["b_ff1"]
    nb["W_ff2"] = bp["W_ff2"].astype(jnp.bfloat16)
    nb["b_ff2"] = bp["b_ff2"]
    for n in ["g_pre_self", "beta_pre_self", "g_pre_cross", "beta_pre_cross",
              "g_pre_ff", "beta_pre_ff"]:
        nb[n] = bp[n]
    return nb


# ----------------------------- model forward (glue + kernels) -----------------------------

def encode_images(images, enc_w_bf16, enc_b, patch_size):
    B, C, Hi, Wi = images.shape
    x = images.reshape(B, C, Hi // patch_size, patch_size, Wi // patch_size, patch_size)
    x = x.transpose(0, 2, 4, 1, 3, 5).reshape(B, -1, C * patch_size * patch_size)
    P = x.shape[1]
    # bf16 activation cast in the wrapper: halves the x-tile HBM traffic of the matmul.
    feats = dense_tiled(x.reshape(B * P, -1).astype(jnp.bfloat16), enc_w_bf16, enc_b)
    return feats.reshape(B, P, enc_w_bf16.shape[1])


def image_captioning_forward(images, text_tokens, attention_mask, params, num_heads,
                             patch_size=8, return_loss=True):
    B, S = text_tokens.shape
    H = params["tok_emb"].shape[1]
    V = params["tok_emb"].shape[0]

    enc_w = params["enc_w"].astype(jnp.bfloat16)
    out_w = params["out_w"].astype(jnp.bfloat16)
    blocks = [_prepare_block(bp) for bp in params["blocks"]]

    image_features = encode_images(images, enc_w, params["enc_b"], patch_size)

    # In the reference the per-sample attention_mask content is unused inside the
    # blocks (key_padding_mask is never applied); only its presence toggles the static
    # causal fill, which is now generated in-kernel from iotas.
    use_mask = attention_mask is not None

    # Embedding gather kept as plain-JAX glue (data-dependent gather).
    hidden = params["tok_emb"][text_tokens] + params["pos_emb"][:S][None, :, :]

    for bp in blocks:
        x_mid, ff_in = run_attention_block(hidden, image_features, bp, num_heads, use_mask)
        hidden = run_ffn_block(ff_in, x_mid, bp)

    logits = dense_tiled(hidden.reshape(B * S, H).astype(jnp.bfloat16), out_w,
                         params["out_b"])
    logits = logits.reshape(B, S, V)

    outputs = {"logits": logits}
    if return_loss:
        labels = text_tokens[:, 1:].reshape(-1)
        shift_logits = logits[:, :-1, :].reshape(-1, V)
        outputs["loss"] = cross_entropy(shift_logits, labels)
        # TODO(synk): wandb.log omitted (no external services in-kernel script).
    return outputs


# ----------------------------- demo -----------------------------

if __name__ == "__main__":
    B, C, IMG = 2, 3, 16
    S, H, NH, LAYERS, V, MAXPOS, PS = 8, 64, 4, 2, 128, 32, 8

    key = jax.random.PRNGKey(0)
    k_img, k_tok, k_par = jax.random.split(key, 3)
    images = jax.random.normal(k_img, (B, C, IMG, IMG), jnp.float32)
    text_tokens = jax.random.randint(k_tok, (B, S), 0, V, jnp.int32)
    attention_mask = jnp.ones((B, S), jnp.int32)

    params = init_params(k_par, V, H, LAYERS, MAXPOS, C * PS * PS)

    outputs = image_captioning_forward(images, text_tokens, attention_mask, params,
                                       num_heads=NH, patch_size=PS, return_loss=True)
    jax.block_until_ready(outputs["logits"])
    jax.block_until_ready(outputs["loss"])

    assert outputs["logits"].shape == (B, S, V)
    assert outputs["loss"].shape == ()
    assert bool(jnp.isfinite(outputs["loss"]))
    print("KERNEL_OK")
</pallas_src>

<mosaic_0001>
module attributes {stable_mosaic.version = 11 : i64} {
  func.func @_dense_kernel(%arg0: i32, %arg1: i32, %arg2: i32, %arg3: memref<8x192xbf16, #tpu.memory_space<vmem>>, %arg4: memref<192x64xbf16, #tpu.memory_space<vmem>>, %arg5: memref<1x64xf32, #tpu.memory_space<vmem>>, %arg6: memref<8x64xf32, #tpu.memory_space<vmem>>, %arg7: memref<8x64xf32, #tpu.memory_space<vmem>>) attributes {dimension_semantics = [#tpu.dimension_semantics<parallel>, #tpu.dimension_semantics<parallel>, #tpu.dimension_semantics<arbitrary>], iteration_bounds = array<i64: 1, 1, 1>, scalar_prefetch = 0 : i64, scratch_operands = 1 : i64, tpu.core_type = #tpu.core_type<tc>, window_params = [{transform_indices = @transform_0, window_bounds = array<i64: 8, 192>}, {transform_indices = @transform_1, window_bounds = array<i64: 192, 64>}, {transform_indices = @transform_2, window_bounds = array<i64: 1, 64>}, {transform_indices = @transform_3, window_bounds = array<i64: 8, 64>}]} {
    %c0_i32 = arith.constant 0 : i32
    %0 = arith.cmpi eq, %arg2, %c0_i32 : i32
    %1 = arith.extui %0 : i1 to i32
    %c0_i32_0 = arith.constant 0 : i32
    %2 = arith.cmpi ne, %1, %c0_i32_0 : i32
    scf.if %2 {
      %cst_10 = arith.constant 0.000000e+00 : f32
      %12 = vector.broadcast %cst_10 : f32 to vector<8x64xf32>
      %c0_11 = arith.constant 0 : index
      %c0_12 = arith.constant 0 : index
      %13 = vector.load %arg7[%c0_11, %c0_12] : memref<8x64xf32, #tpu.memory_space<vmem>>, vector<8x64xf32>
      tpu.vector_store %arg7[%c0_11, %c0_12], %12 {strides = array<i32>} : memref<8x64xf32, #tpu.memory_space<vmem>>, vector<8x64xf32>,
    } else {
    }
    %c0 = arith.constant 0 : index
    %c0_1 = arith.constant 0 : index
    %3 = vector.load %arg7[%c0, %c0_1] : memref<8x64xf32, #tpu.memory_space<vmem>>, vector<8x64xf32>
    %c0_2 = arith.constant 0 : index
    %c0_3 = arith.constant 0 : index
    %4 = vector.load %arg3[%c0_2, %c0_3] : memref<8x192xbf16, #tpu.memory_space<vmem>>, vector<8x192xbf16>
    %c0_4 = arith.constant 0 : index
    %c0_5 = arith.constant 0 : index
    %5 = vector.load %arg4[%c0_4, %c0_5] : memref<192x64xbf16, #tpu.memory_space<vmem>>, vector<192x64xbf16>
    %cst = arith.constant dense<0.000000e+00> : vector<8x64xf32>
    %6 = tpu.matmul %4, %5, %cst {dimension_numbers = #tpu.dot_dimension_numbers<[1], [0], [0], [1], [0, 0, 1, 1], [], []>} : vector<8x192xbf16>, vector<192x64xbf16>, vector<8x64xf32> -> vector<8x64xf32>
    %7 = arith.addf %3, %6 : vector<8x64xf32>
    %c0_6 = arith.constant 0 : index
    %c0_7 = arith.constant 0 : index
    %8 = vector.load %arg7[%c0_6, %c0_7] : memref<8x64xf32, #tpu.memory_space<vmem>>, vector<8x64xf32>
    tpu.vector_store %arg7[%c0_6, %c0_7], %7 {strides = array<i32>} : memref<8x64xf32, #tpu.memory_space<vmem>>, vector<8x64xf32>,
    %c0_i32_8 = arith.constant 0 : i32
    %9 = arith.cmpi eq, %arg2, %c0_i32_8 : i32
    %10 = arith.extui %9 : i1 to i32
    %c0_i32_9 = arith.constant 0 : i32
    %11 = arith.cmpi ne, %10, %c0_i32_9 : i32
    scf.if %11 {
      %c0_10 = arith.constant 0 : index
      %c0_11 = arith.constant 0 : index
      %12 = vector.load %arg7[%c0_10, %c0_11] : memref<8x64xf32, #tpu.memory_space<vmem>>, vector<8x64xf32>
      %c0_12 = arith.constant 0 : index
      %c0_13 = arith.constant 0 : index
      %13 = vector.load %arg5[%c0_12, %c0_13] : memref<1x64xf32, #tpu.memory_space<vmem>>, vector<1x64xf32>
      %14 = vector.broadcast %13 : vector<1x64xf32> to vector<8x64xf32>
      %15 = arith.addf %12, %14 : vector<8x64xf32>
      %c0_14 = arith.constant 0 : index
      %c0_15 = arith.constant 0 : index
      %16 = vector.load %arg6[%c0_14, %c0_15] : memref<8x64xf32, #tpu.memory_space<vmem>>, vector<8x64xf32>
      tpu.vector_store %arg6[%c0_14, %c0_15], %15 {strides = array<i32>} : memref<8x64xf32, #tpu.memory_space<vmem>>, vector<8x64xf32>,
    } else {
    }
    return
  }
  func.func @transform_0(%arg0: i32, %arg1: i32, %arg2: i32) -> (i32, i32) {
    %c0_i32 = arith.constant 0 : i32
    return %arg0, %arg2 : i32, i32
  }
  func.func @transform_1(%arg0: i32, %arg1: i32, %arg2: i32) -> (i32, i32) {
    %c0_i32 = arith.constant 0 : i32
    return %arg2, %arg1 : i32, i32
  }
  func.func @transform_2(%arg0: i32, %arg1: i32, %arg2: i32) -> (i32, i32) {
    %c0_i32 = arith.constant 0 : i32
    %c0_i32_0 = arith.constant 0 : i32
    return %c0_i32, %arg1 : i32, i32
  }
  func.func @transform_3(%arg0: i32, %arg1: i32, %arg2: i32) -> (i32, i32) {
    %c0_i32 = arith.constant 0 : i32
    return %arg0, %arg1 : i32, i32
  }
}

</mosaic_0001>

<llo_original>
// kernel: tpu_custom_call.1
$region0: #{tpu_custom_call.1}
  #allocation0 [shape = 'u32[]', space=smem, size = 0x4, offset = 0x4, fixed_abs, tag = 'smem constant byte address 0x4 - core index']
  #allocation1 [shape = 'u32[72,128]{1,0:T(1,128)}', space=vmem, size = 0x9000, scoped, tag = 'internal scratch']
  #allocation2 [shape = 'f32[8,64]{1,0:T(8,128)}', space=vmem, size = 0x1000, scoped, tag = 'scratch operand']
  %s0 = inlined_call_operand.vmem [shape: bf16[8,192], index: 0, kind: input, shape index: {}]
  %s1 = inlined_call_operand.vmem [shape: bf16[192,64], index: 1, kind: input, shape index: {}]
  %s2 = inlined_call_operand.vmem [shape: f32[1,64], index: 2, kind: input, shape index: {}]
  %s3 = inlined_call_operand.hbm [shape: f32[8,64], index: 3, kind: output, shape index: {}]
  %s4 = sld [smem:[#allocation0]]
  $region30: #{tpu_custom_call.1} parent=0
    _
  %s6 = ssub.s32 1, %s4
  %s7 = scalar_select 0, %s6, %s4
  $region1: #{tpu_custom_call.1} parent=0
    #allocation3 [shape = 'u8[4096]{0}', space=vmem, size = 0x1000, scoped, tag = 'output window, operand 0, single buffered']
    #allocation4 [shape = 's32[1]{0}', space=sflag, size = 0x4, scoped, tag = 'scoped memory for tpu_custom_call.1']
    %8 = vsyncpa [#allocation4], 0
    // Predicated region
    $region2: #{tpu_custom_call.1} parent=1 // pred_check
      _
    $region3: #{tpu_custom_call.1} parent=1 // pred_check_branch
      %10 = sbr.rel (0) target = $region5
    $region4: #{tpu_custom_call.1} parent=1 // pred_region
      _
    $region5: #{tpu_custom_call.1} parent=1 // pred_fallthru
      _
    // Predicated region
    $region6: #{tpu_custom_call.1} parent=1 // pred_check
      _
    $region7: #{tpu_custom_call.1} parent=1 // pred_check_branch
      %12 = sbr.rel (0) target = $region9
    $region8: #{tpu_custom_call.1} parent=1 // pred_region
      _
    $region9: #{tpu_custom_call.1} parent=1 // pred_fallthru
      _
    // Predicated region
    $region10: #{tpu_custom_call.1} parent=1 // pred_check
      _
    $region11: #{tpu_custom_call.1} parent=1 // pred_check_branch
      %14 = sbr.rel (0) target = $region13
    $region12: #{tpu_custom_call.1} parent=1 // pred_region
      _
    $region13: #{tpu_custom_call.1} parent=1 // pred_fallthru
      _
    %p16 = scmp.eq.s32.totalorder 0, 0
    // Predicated region
    $region14: #{tpu_custom_call.1} parent=1 // pred_check
      %p17 = pneg %p16
    $region15: #{tpu_custom_call.1} parent=1 // pred_check_branch
      %19 = sbr.rel (%p17) target = $region17
    $region16: #{tpu_custom_call.1} parent=1 // pred_region
      %vm20 = vcmask 523264
      %21 = vst.msk [vmem:[#allocation2] sm:$0xff] %vm20, 0.0
    $region17: #{tpu_custom_call.1} parent=1 // pred_fallthru
      _
    %v22 = vld [vmem:[#allocation2] sm:$0xff]
    %v23 = vld [vmem:[%s0] sm:$0xff]
    %v24 = vld [vmem:[%s1] sm:$0xf]
    %v25 = vld [vmem:[%s1 + $0x4] sm:$0xf]
    %v26 = vld [vmem:[%s1 + $0x8] sm:$0xf]
    %v27 = vld [vmem:[%s1 + $0xc] sm:$0xf]
    %v28 = vld [vmem:[%s1 + $0x10] sm:$0xf]
    %v29 = vld [vmem:[%s1 + $0x14] sm:$0xf]
    %v30 = vld [vmem:[%s1 + $0x18] sm:$0xf]
    %v31 = vld [vmem:[%s1 + $0x1c] sm:$0xf]
    %v32 = vld [vmem:[%s1 + $0x20] sm:$0xf]
    %v33 = vld [vmem:[%s1 + $0x24] sm:$0xf]
    %v34 = vld [vmem:[%s1 + $0x28] sm:$0xf]
    %v35 = vld [vmem:[%s1 + $0x2c] sm:$0xf]
    %v36 = vld [vmem:[%s1 + $0x30] sm:$0xf]
    %v37 = vld [vmem:[%s1 + $0x34] sm:$0xf]
    %v38 = vld [vmem:[%s1 + $0x38] sm:$0xf]
    %v39 = vld [vmem:[%s1 + $0x3c] sm:$0xf]
    %v40 = vld [vmem:[%s1 + $0x40] sm:$0xf]
    %v41 = vld [vmem:[%s1 + $0x44] sm:$0xf]
    %v42 = vld [vmem:[%s1 + $0x48] sm:$0xf]
    %v43 = vld [vmem:[%s1 + $0x4c] sm:$0xf]
    %v44 = vld [vmem:[%s1 + $0x50] sm:$0xf]
    %v45 = vld [vmem:[%s1 + $0x54] sm:$0xf]
    %v46 = vld [vmem:[%s1 + $0x58] sm:$0xf]
    %v47 = vld [vmem:[%s1 + $0x5c] sm:$0xf]
    %v49 = vunpack.c.l.b16 %v23
    %v50 = vunpack.c.h.b16 %v23
    %v51 = vpack.c.b16 %v49, %v49
    %v52 = vpack.c.b16 %v50, %v50
    %v78 = vunpack.c.l.b16 %v24
    %v79 = vunpack.c.l.b16 %v25
    %v80 = vunpack.c.l.b16 %v26
    %v81 = vunpack.c.l.b16 %v27
    %v82 = vunpack.c.l.b16 %v28
    %v83 = vunpack.c.l.b16 %v29
    %v84 = vunpack.c.l.b16 %v30
    %v85 = vunpack.c.l.b16 %v31
    %v86 = vunpack.c.l.b16 %v32
    %v87 = vunpack.c.l.b16 %v33
    %v88 = vunpack.c.l.b16 %v34
    %v89 = vunpack.c.l.b16 %v35
    %v90 = vunpack.c.l.b16 %v36
    %v91 = vunpack.c.l.b16 %v37
    %v92 = vunpack.c.l.b16 %v38
    %v93 = vunpack.c.l.b16 %v39
    %v94 = vunpack.c.l.b16 %v40
    %v95 = vunpack.c.l.b16 %v41
    %v96 = vunpack.c.l.b16 %v42
    %v97 = vunpack.c.l.b16 %v43
    %v98 = vunpack.c.l.b16 %v44
    %v99 = vunpack.c.l.b16 %v45
    %v100 = vunpack.c.l.b16 %v46
    %v101 = vunpack.c.l.b16 %v47
    %v102 = vpack.c.b16 %v79, %v78
    %v103 = vpack.c.b16 %v81, %v80
    %v104 = vpack.c.b16 %v83, %v82
    %v105 = vpack.c.b16 %v85, %v84
    %v106 = vpack.c.b16 %v87, %v86
    %v107 = vpack.c.b16 %v89, %v88
    %v108 = vpack.c.b16 %v91, %v90
    %v109 = vpack.c.b16 %v93, %v92
    %v110 = vpack.c.b16 %v95, %v94
    %v111 = vpack.c.b16 %v97, %v96
    %v112 = vpack.c.b16 %v99, %v98
    %v113 = vpack.c.b16 %v101, %v100
    %vm126 = vcmask 523264
    %v128 = vsel %vm126, %v52, 0
    %130 = vmatpush.bf16.msra.mxu0 %v109
    %131 = vmatpush.bf16.msra.mxu0 %v108
    %132 = vmatpush.bf16.msra.mxu0 %v107
    %133 = vmatpush.bf16.msra.mxu0 %v106
    %134 = vmatpush.bf16.msra.mxu0 %v105
    %135 = vmatpush.bf16.msra.mxu0 %v104
    %136 = vmatpush.bf16.msra.mxu0 %v103
    %137 = vmatpush.bf16.msra.mxu0 %v102
    %138 = vmatmul.bf16.gmra.mxu0 %v51
    %v139 = vpop.f32.mrf.mxu0
    %v140 = vadd.f32 0.0, %v139
    %v141 = vpop.f32.mrf.mxu0
    %142 = vdwg.mxu0
    %143 = vmatpush.bf16.msra.mxu0 0
    %144 = vmatpush.bf16.msra.mxu0 0
    %145 = vmatpush.bf16.msra.mxu0 0
    %146 = vmatpush.bf16.msra.mxu0 0
    %147 = vmatpush.bf16.msra.mxu0 %v113
    %148 = vmatpush.bf16.msra.mxu0 %v112
    %149 = vmatpush.bf16.msra.mxu0 %v111
    %150 = vmatpush.bf16.msra.mxu0 %v110
    %151 = vmatmul.bf16.gmra.mxu0 %v128
    %v152 = vpop.f32.mrf.mxu0
    %v153 = vadd.f32 %v140, %v152
    %v154 = vpop.f32.mrf.mxu0
    %155 = vdwg.mxu0
    %v156 = vadd.f32 %v22, %v153
    %157 = vst.msk [vmem:[#allocation2] sm:$0xff] %vm126, %v156
    // Predicated region
    $region18: #{tpu_custom_call.1} parent=1 // pred_check
      %p158 = pneg %p16
    $region19: #{tpu_custom_call.1} parent=1 // pred_check_branch
      %160 = sbr.rel (%p158) target = $region21
    $region20: #{tpu_custom_call.1} parent=1 // pred_region
      %v161 = vld [vmem:[#allocation2] sm:$0xff]
      %v162 = vld [vmem:[%s2] sm:$0x1]
      %v164 = vperm.slane %v162, 0
      %v166 = vadd.f32 %v161, %v164
      %167 = vst.msk [vmem:[#allocation3] sm:$0xff] %vm126, %v166
    $region21: #{tpu_custom_call.1} parent=1 // pred_fallthru
      _
    // Predicated region
    $region22: #{tpu_custom_call.1} parent=1 // pred_check
      _
    $region23: #{tpu_custom_call.1} parent=1 // pred_check_branch
      %169 = sbr.rel (0) target = $region25
    $region24: #{tpu_custom_call.1} parent=1 // pred_region
      %171 = vsyncadd [#allocation4], 0
      %s173 = sshll.u32 [#allocation3], 4
      %s174 = int_to_ptr.vmem [resolvable:$true] %s173
      %s175 = sshll.u32 %s3, 4
      %s176 = int_to_ptr.hbm [resolvable:$true] %s175
      %178 = dma.vmem_to_hbm [thread:$0]  %s174, 128, %s176, [#allocation4]
    $region25: #{tpu_custom_call.1} parent=1 // pred_fallthru
      _
    // Predicated region
    $region26: #{tpu_custom_call.1} parent=1 // pred_check
      _
    $region27: #{tpu_custom_call.1} parent=1 // pred_check_branch
      %180 = sbr.rel (0) target = $region29
    $region28: #{tpu_custom_call.1} parent=1 // pred_region
      %182 = dma.done [#allocation4], 128
    $region29: #{tpu_custom_call.1} parent=1 // pred_fallthru
      _
    %183 = vsyncpa [#allocation4], 1

</llo_original>
